<compile_context>
chip_gen: v5e
topology: v5e:2x2
jax: 0.10.0
libtpu: 0.0.40
codegen_flags: <defaults>
</compile_context>

<pallas_src>
import functools

import jax
import jax.numpy as jnp
from jax.experimental import pallas as pl
from jax.experimental.pallas import tpu as pltpu

SMOOTH = 1e-6
LANE = 128
SUBLANE = 8           # f32 vreg sublane count; one (8,128) slice == one vreg
ROW_ALIGN = 32        # worst-case sublane packing (int8/bool) for block alignment
VMEM_LIMIT_BYTES = 32 * 1024 * 1024


def _max_block_rows():
    """Per-generation block size (rows of 128 lanes), per perf review."""
    try:
        kind = jax.devices()[0].device_kind.lower()
    except Exception:
        return 4096
    if "v5" in kind:
        # v5e scoped-VMEM default is 16 MiB; 4096 rows -> 2 MiB/input/step,
        # 8 MiB double-buffered, and per-step DMA (~2.5 us) already dwarfs
        # the fixed step overhead.
        return 4096
    # v6e / v7x: 8192 rows -> 4 MiB/input/step, 16 MiB double-buffered.
    return 8192


def _round_up(x, m):
    return ((x + m - 1) // m) * m


def _dice_partials_kernel(p_ref, t_ref, out_ref, *, block_rows, total_rows,
                          num_blocks):
    """Emit per-block partial sums of p*t (sublanes 0-7) and p+t (8-15)."""

    def accumulate(valid_rows):
        # valid_rows is a static Python int.
        full_groups = valid_rows // SUBLANE
        rem = valid_rows % SUBLANE
        zero = jnp.zeros((SUBLANE, LANE), jnp.float32)

        def body(g, carry):
            acc_i, acc_s = carry
            r0 = pl.multiple_of(g * SUBLANE, SUBLANE)
            ps = p_ref[pl.ds(r0, SUBLANE), :].astype(jnp.float32)
            ts = t_ref[pl.ds(r0, SUBLANE), :].astype(jnp.float32)
            return acc_i + ps * ts, acc_s + (ps + ts)

        acc_i, acc_s = jax.lax.fori_loop(
            0, full_groups, body, (zero, zero),
            unroll=min(8, max(full_groups, 1)))

        if rem:
            # Partial (ragged) final group of the last block: mask rows
            # beyond valid_rows before they touch the accumulators.
            r0 = full_groups * SUBLANE  # static; stays inside the VMEM block
            ps = p_ref[pl.ds(r0, SUBLANE), :].astype(jnp.float32)
            ts = t_ref[pl.ds(r0, SUBLANE), :].astype(jnp.float32)
            mask = jax.lax.broadcasted_iota(jnp.int32, (SUBLANE, LANE), 0) < rem
            ps = jnp.where(mask, ps, 0.0)
            ts = jnp.where(mask, ts, 0.0)
            acc_i = acc_i + ps * ts
            acc_s = acc_s + (ps + ts)

        # Single merged lane-dense output block: one DMA per step.
        out_ref[0, :SUBLANE, :] = acc_i
        out_ref[0, SUBLANE:, :] = acc_s

    if total_rows % block_rows == 0:
        # Evenly divided grid: no masking code anywhere in the loop.
        accumulate(block_rows)
    else:
        last_rows = total_rows - (num_blocks - 1) * block_rows
        is_last = pl.program_id(0) == pl.num_programs(0) - 1

        @pl.when(is_last)
        def _():
            accumulate(last_rows)

        @pl.when(jnp.logical_not(is_last))
        def _():
            accumulate(block_rows)


def dice_loss(preds, targets, smooth=SMOOTH):
    assert preds.shape == targets.shape
    p = preds.reshape(-1)
    t = targets.reshape(-1)
    n = p.shape[0]

    # Sub-128 tail handled in plain JAX so the common 128-aligned case needs
    # zero pre-copy (no jnp.pad of the full arrays).
    n_main = (n // LANE) * LANE
    tail_inter = jnp.float32(0.0)
    tail_sums = jnp.float32(0.0)
    if n_main != n:
        pt = p[n_main:].astype(jnp.float32)
        tt = t[n_main:].astype(jnp.float32)
        tail_inter = jnp.sum(pt * tt)
        tail_sums = jnp.sum(pt) + jnp.sum(tt)
        p = p[:n_main]  # prefix slice only taken for non-128-aligned inputs
        t = t[:n_main]

    if n_main == 0:
        intersection = tail_inter
        total = tail_sums
    else:
        rows = n_main // LANE
        block_rows = min(_round_up(rows, ROW_ALIGN), _max_block_rows())
        num_blocks = pl.cdiv(rows, block_rows)

        p2 = p.reshape(rows, LANE)
        t2 = t.reshape(rows, LANE)

        kernel = functools.partial(
            _dice_partials_kernel, block_rows=block_rows, total_rows=rows,
            num_blocks=num_blocks)

        partials = pl.pallas_call(
            kernel,
            out_shape=jax.ShapeDtypeStruct((num_blocks, 2 * SUBLANE, LANE),
                                           jnp.float32),
            grid_spec=pltpu.PrefetchScalarGridSpec(
                num_scalar_prefetch=0,
                grid=(num_blocks,),
                in_specs=[
                    pl.BlockSpec((block_rows, LANE), lambda i: (i, 0)),
                    pl.BlockSpec((block_rows, LANE), lambda i: (i, 0)),
                ],
                out_specs=pl.BlockSpec((1, 2 * SUBLANE, LANE),
                                       lambda i: (i, 0, 0)),
            ),
            compiler_params=pltpu.CompilerParams(
                dimension_semantics=("parallel",),
                vmem_limit_bytes=VMEM_LIMIT_BYTES,
            ),
        )(p2, t2)

        # Tiny finalize in plain JAX.
        intersection = jnp.sum(partials[:, :SUBLANE, :]) + tail_inter
        total = jnp.sum(partials[:, SUBLANE:, :]) + tail_sums

    dice = (2.0 * intersection + smooth) / (total + smooth)
    return 1.0 - dice


def dice_loss_ref(preds, targets, smooth=SMOOTH):
    p = preds.reshape(-1).astype(jnp.float32)
    t = targets.reshape(-1).astype(jnp.float32)
    inter = jnp.sum(p * t)
    dice = (2.0 * inter + smooth) / (jnp.sum(p) + jnp.sum(t) + smooth)
    return 1.0 - dice


if __name__ == "__main__":
    key = jax.random.PRNGKey(0)
    k1, k2 = jax.random.split(key)
    # NCHW-like shapes from the caller (e.g. sigmoid probs vs. binary mask).
    preds = jax.nn.sigmoid(jax.random.normal(k1, (2, 4, 16, 16), jnp.float32))
    targets = (jax.random.uniform(k2, (2, 4, 16, 16)) > 0.5).astype(jnp.float32)

    loss = jax.block_until_ready(dice_loss(preds, targets))
    ref = jax.block_until_ready(dice_loss_ref(preds, targets))
    assert jnp.allclose(loss, ref, rtol=1e-5, atol=1e-6), (loss, ref)
    print("KERNEL_OK")
</pallas_src>

<mosaic_0001>
module attributes {stable_mosaic.version = 11 : i64} {
  func.func @_dice_partials_kernel(%arg0: i32, %arg1: memref<32x128xf32, #tpu.memory_space<vmem>>, %arg2: memref<32x128xf32, #tpu.memory_space<vmem>>, %arg3: memref<1x16x128xf32, #tpu.memory_space<vmem>>) attributes {dimension_semantics = [#tpu.dimension_semantics<parallel>], iteration_bounds = array<i64: 1>, scalar_prefetch = 0 : i64, scratch_operands = 0 : i64, tpu.core_type = #tpu.core_type<tc>, window_params = [{transform_indices = @transform_0, window_bounds = array<i64: 32, 128>}, {transform_indices = @transform_1, window_bounds = array<i64: 32, 128>}, {transform_indices = @transform_2, window_bounds = array<i64: 1, 16, 128>}]} {
    %c0_i32 = arith.constant 0 : i32
    %0 = arith.cmpi eq, %arg0, %c0_i32 : i32
    %1 = arith.extui %0 : i1 to i32
    %c0_i32_0 = arith.constant 0 : i32
    %2 = arith.cmpi ne, %1, %c0_i32_0 : i32
    scf.if %2 {
      %cst = arith.constant 0.000000e+00 : f32
      %6 = vector.broadcast %cst : f32 to vector<8x128xf32>
      %c0_i32_2 = arith.constant 0 : i32
      %c8_i32 = arith.constant 8 : i32
      %7 = arith.muli %c0_i32_2, %c8_i32 : i32
      %8 = tpu.assume_multiple %7, 8 : i32
      %9 = arith.index_cast %8 : i32 to index
      %c0 = arith.constant 0 : index
      %10 = vector.load %arg1[%9, %c0] : memref<32x128xf32, #tpu.memory_space<vmem>>, vector<8x128xf32>
      %11 = arith.index_cast %8 : i32 to index
      %c0_3 = arith.constant 0 : index
      %12 = vector.load %arg2[%11, %c0_3] : memref<32x128xf32, #tpu.memory_space<vmem>>, vector<8x128xf32>
      %13 = arith.mulf %10, %12 : vector<8x128xf32>
      %14 = arith.addf %6, %13 : vector<8x128xf32>
      %15 = arith.addf %10, %12 : vector<8x128xf32>
      %16 = arith.addf %6, %15 : vector<8x128xf32>
      %c1_i32 = arith.constant 1 : i32
      %c8_i32_4 = arith.constant 8 : i32
      %17 = arith.muli %c1_i32, %c8_i32_4 : i32
      %18 = tpu.assume_multiple %17, 8 : i32
      %19 = arith.index_cast %18 : i32 to index
      %c0_5 = arith.constant 0 : index
      %20 = vector.load %arg1[%19, %c0_5] : memref<32x128xf32, #tpu.memory_space<vmem>>, vector<8x128xf32>
      %21 = arith.index_cast %18 : i32 to index
      %c0_6 = arith.constant 0 : index
      %22 = vector.load %arg2[%21, %c0_6] : memref<32x128xf32, #tpu.memory_space<vmem>>, vector<8x128xf32>
      %23 = arith.mulf %20, %22 : vector<8x128xf32>
      %24 = arith.addf %14, %23 : vector<8x128xf32>
      %25 = arith.addf %20, %22 : vector<8x128xf32>
      %26 = arith.addf %16, %25 : vector<8x128xf32>
      %c2_i32 = arith.constant 2 : i32
      %c0_7 = arith.constant 0 : index
      %c0_8 = arith.constant 0 : index
      %c0_9 = arith.constant 0 : index
      %27 = vector.load %arg3[%c0_7, %c0_8, %c0_9] : memref<1x16x128xf32, #tpu.memory_space<vmem>>, vector<1x8x128xf32>
      %28 = vector.shape_cast %27 : vector<1x8x128xf32> to vector<8x128xf32>
      %29 = vector.shape_cast %24 : vector<8x128xf32> to vector<1x8x128xf32>
      tpu.vector_store %arg3[%c0_7, %c0_8, %c0_9], %29 {strides = array<i32>} : memref<1x16x128xf32, #tpu.memory_space<vmem>>, vector<1x8x128xf32>,
      %c0_10 = arith.constant 0 : index
      %c8 = arith.constant 8 : index
      %c0_11 = arith.constant 0 : index
      %30 = vector.load %arg3[%c0_10, %c8, %c0_11] : memref<1x16x128xf32, #tpu.memory_space<vmem>>, vector<1x8x128xf32>
      %31 = vector.shape_cast %30 : vector<1x8x128xf32> to vector<8x128xf32>
      %32 = vector.shape_cast %26 : vector<8x128xf32> to vector<1x8x128xf32>
      tpu.vector_store %arg3[%c0_10, %c8, %c0_11], %32 {strides = array<i32>} : memref<1x16x128xf32, #tpu.memory_space<vmem>>, vector<1x8x128xf32>,
    } else {
    }
    %true = arith.constant true
    %3 = arith.xori %0, %true : i1
    %4 = arith.extui %3 : i1 to i32
    %c0_i32_1 = arith.constant 0 : i32
    %5 = arith.cmpi ne, %4, %c0_i32_1 : i32
    scf.if %5 {
      %cst = arith.constant 0.000000e+00 : f32
      %6 = vector.broadcast %cst : f32 to vector<8x128xf32>
      %c0_i32_2 = arith.constant 0 : i32
      %c8_i32 = arith.constant 8 : i32
      %7 = arith.muli %c0_i32_2, %c8_i32 : i32
      %8 = tpu.assume_multiple %7, 8 : i32
      %9 = arith.index_cast %8 : i32 to index
      %c0 = arith.constant 0 : index
      %10 = vector.load %arg1[%9, %c0] : memref<32x128xf32, #tpu.memory_space<vmem>>, vector<8x128xf32>
      %11 = arith.index_cast %8 : i32 to index
      %c0_3 = arith.constant 0 : index
      %12 = vector.load %arg2[%11, %c0_3] : memref<32x128xf32, #tpu.memory_space<vmem>>, vector<8x128xf32>
      %13 = arith.mulf %10, %12 : vector<8x128xf32>
      %14 = arith.addf %6, %13 : vector<8x128xf32>
      %15 = arith.addf %10, %12 : vector<8x128xf32>
      %16 = arith.addf %6, %15 : vector<8x128xf32>
      %c1_i32 = arith.constant 1 : i32
      %c8_i32_4 = arith.constant 8 : i32
      %17 = arith.muli %c1_i32, %c8_i32_4 : i32
      %18 = tpu.assume_multiple %17, 8 : i32
      %19 = arith.index_cast %18 : i32 to index
      %c0_5 = arith.constant 0 : index
      %20 = vector.load %arg1[%19, %c0_5] : memref<32x128xf32, #tpu.memory_space<vmem>>, vector<8x128xf32>
      %21 = arith.index_cast %18 : i32 to index
      %c0_6 = arith.constant 0 : index
      %22 = vector.load %arg2[%21, %c0_6] : memref<32x128xf32, #tpu.memory_space<vmem>>, vector<8x128xf32>
      %23 = arith.mulf %20, %22 : vector<8x128xf32>
      %24 = arith.addf %14, %23 : vector<8x128xf32>
      %25 = arith.addf %20, %22 : vector<8x128xf32>
      %26 = arith.addf %16, %25 : vector<8x128xf32>
      %c2_i32 = arith.constant 2 : i32
      %c8_i32_7 = arith.constant 8 : i32
      %27 = arith.muli %c2_i32, %c8_i32_7 : i32
      %28 = tpu.assume_multiple %27, 8 : i32
      %29 = arith.index_cast %28 : i32 to index
      %c0_8 = arith.constant 0 : index
      %30 = vector.load %arg1[%29, %c0_8] : memref<32x128xf32, #tpu.memory_space<vmem>>, vector<8x128xf32>
      %31 = arith.index_cast %28 : i32 to index
      %c0_9 = arith.constant 0 : index
      %32 = vector.load %arg2[%31, %c0_9] : memref<32x128xf32, #tpu.memory_space<vmem>>, vector<8x128xf32>
      %33 = arith.mulf %30, %32 : vector<8x128xf32>
      %34 = arith.addf %24, %33 : vector<8x128xf32>
      %35 = arith.addf %30, %32 : vector<8x128xf32>
      %36 = arith.addf %26, %35 : vector<8x128xf32>
      %c3_i32 = arith.constant 3 : i32
      %c8_i32_10 = arith.constant 8 : i32
      %37 = arith.muli %c3_i32, %c8_i32_10 : i32
      %38 = tpu.assume_multiple %37, 8 : i32
      %39 = arith.index_cast %38 : i32 to index
      %c0_11 = arith.constant 0 : index
      %40 = vector.load %arg1[%39, %c0_11] : memref<32x128xf32, #tpu.memory_space<vmem>>, vector<8x128xf32>
      %41 = arith.index_cast %38 : i32 to index
      %c0_12 = arith.constant 0 : index
      %42 = vector.load %arg2[%41, %c0_12] : memref<32x128xf32, #tpu.memory_space<vmem>>, vector<8x128xf32>
      %43 = arith.mulf %40, %42 : vector<8x128xf32>
      %44 = arith.addf %34, %43 : vector<8x128xf32>
      %45 = arith.addf %40, %42 : vector<8x128xf32>
      %46 = arith.addf %36, %45 : vector<8x128xf32>
      %c4_i32 = arith.constant 4 : i32
      %c0_13 = arith.constant 0 : index
      %c0_14 = arith.constant 0 : index
      %c0_15 = arith.constant 0 : index
      %47 = vector.load %arg3[%c0_13, %c0_14, %c0_15] : memref<1x16x128xf32, #tpu.memory_space<vmem>>, vector<1x8x128xf32>
      %48 = vector.shape_cast %47 : vector<1x8x128xf32> to vector<8x128xf32>
      %49 = vector.shape_cast %44 : vector<8x128xf32> to vector<1x8x128xf32>
      tpu.vector_store %arg3[%c0_13, %c0_14, %c0_15], %49 {strides = array<i32>} : memref<1x16x128xf32, #tpu.memory_space<vmem>>, vector<1x8x128xf32>,
      %c0_16 = arith.constant 0 : index
      %c8 = arith.constant 8 : index
      %c0_17 = arith.constant 0 : index
      %50 = vector.load %arg3[%c0_16, %c8, %c0_17] : memref<1x16x128xf32, #tpu.memory_space<vmem>>, vector<1x8x128xf32>
      %51 = vector.shape_cast %50 : vector<1x8x128xf32> to vector<8x128xf32>
      %52 = vector.shape_cast %46 : vector<8x128xf32> to vector<1x8x128xf32>
      tpu.vector_store %arg3[%c0_16, %c8, %c0_17], %52 {strides = array<i32>} : memref<1x16x128xf32, #tpu.memory_space<vmem>>, vector<1x8x128xf32>,
    } else {
    }
    return
  }
  func.func @transform_0(%arg0: i32) -> (i32, i32) {
    %c0_i32 = arith.constant 0 : i32
    %c0_i32_0 = arith.constant 0 : i32
    return %arg0, %c0_i32 : i32, i32
  }
  func.func @transform_1(%arg0: i32) -> (i32, i32) {
    %c0_i32 = arith.constant 0 : i32
    %c0_i32_0 = arith.constant 0 : i32
    return %arg0, %c0_i32 : i32, i32
  }
  func.func @transform_2(%arg0: i32) -> (i32, i32, i32) {
    %c0_i32 = arith.constant 0 : i32
    %c0_i32_0 = arith.constant 0 : i32
    %c0_i32_1 = arith.constant 0 : i32
    return %arg0, %c0_i32, %c0_i32_0 : i32, i32, i32
  }
}

</mosaic_0001>

<llo_original>
// kernel: tpu_custom_call.1
$region0: #{tpu_custom_call.1}
  #allocation0 [shape = 'u32[]', space=smem, size = 0x4, offset = 0x4, fixed_abs, tag = 'smem constant byte address 0x4 - core index']
  #allocation1 [shape = 'u32[72,128]{1,0:T(1,128)}', space=vmem, size = 0x9000, scoped, tag = 'internal scratch']
  %s0 = inlined_call_operand.hbm [shape: f32[16,128], index: 0, kind: input, shape index: {}]
  %s1 = inlined_call_operand.hbm [shape: f32[16,128], index: 1, kind: input, shape index: {}]
  %s2 = inlined_call_operand.hbm [shape: f32[1,16,128], index: 2, kind: output, shape index: {}]
  %s3 = sld [smem:[#allocation0]]
  $region34: #{tpu_custom_call.1} parent=0
    _
  %s5 = ssub.s32 1, %s3
  %s6 = scalar_select 0, %s5, %s3
  $region1: #{tpu_custom_call.1} parent=0
    #allocation2 [shape = 'u8[16384]{0}', space=vmem, size = 0x4000, scoped, tag = 'input window, operand 0, single buffered']
    #allocation3 [shape = 's32[1]{0}', space=sflag, size = 0x4, scoped, tag = 'scoped memory for tpu_custom_call.1']
    #allocation4 [shape = 's32[1]{0}', space=sflag, size = 0x4, scoped, tag = 'scoped memory for tpu_custom_call.1']
    #allocation5 [shape = 'u8[16384]{0}', space=vmem, size = 0x4000, scoped, tag = 'input window, operand 1, single buffered']
    #allocation6 [shape = 's32[1]{0}', space=sflag, size = 0x4, scoped, tag = 'scoped memory for tpu_custom_call.1']
    #allocation7 [shape = 'u8[8192]{0}', space=vmem, size = 0x2000, scoped, tag = 'output window, operand 0, single buffered']
    %7 = vsyncpa [#allocation3], 0
    %8 = vsyncpa [#allocation6], 0
    %9 = vsyncpa [#allocation4], 0
    // Predicated region
    $region2: #{tpu_custom_call.1} parent=1 // pred_check
      _
    $region3: #{tpu_custom_call.1} parent=1 // pred_check_branch
      %11 = sbr.rel (0) target = $region5
    $region4: #{tpu_custom_call.1} parent=1 // pred_region
      %13 = vsyncadd [#allocation3], 256
      %s14 = sshll.u32 %s0, 4
      %s15 = int_to_ptr.hbm [resolvable:$true] %s14
      %s16 = sshll.u32 [#allocation2], 4
      %s17 = int_to_ptr.vmem [resolvable:$true] %s16
      %22 = dma.hbm_to_vmem [thread:$0]  %s15, 256, %s17, [#allocation3], 128, 128, 8
    $region5: #{tpu_custom_call.1} parent=1 // pred_fallthru
      _
    // Predicated region
    $region6: #{tpu_custom_call.1} parent=1 // pred_check
      _
    $region7: #{tpu_custom_call.1} parent=1 // pred_check_branch
      %24 = sbr.rel (0) target = $region9
    $region8: #{tpu_custom_call.1} parent=1 // pred_region
      %26 = vsyncadd [#allocation6], 256
      %s27 = sshll.u32 %s1, 4
      %s28 = int_to_ptr.hbm [resolvable:$true] %s27
      %s29 = sshll.u32 [#allocation5], 4
      %s30 = int_to_ptr.vmem [resolvable:$true] %s29
      %35 = dma.hbm_to_vmem [thread:$0]  %s28, 256, %s30, [#allocation6], 128, 128, 8
    $region9: #{tpu_custom_call.1} parent=1 // pred_fallthru
      _
    // Predicated region
    $region10: #{tpu_custom_call.1} parent=1 // pred_check
      _
    $region11: #{tpu_custom_call.1} parent=1 // pred_check_branch
      %37 = sbr.rel (0) target = $region13
    $region12: #{tpu_custom_call.1} parent=1 // pred_region
      %39 = dma.done [#allocation3], 512
    $region13: #{tpu_custom_call.1} parent=1 // pred_fallthru
      _
    // Predicated region
    $region14: #{tpu_custom_call.1} parent=1 // pred_check
      _
    $region15: #{tpu_custom_call.1} parent=1 // pred_check_branch
      %41 = sbr.rel (0) target = $region17
    $region16: #{tpu_custom_call.1} parent=1 // pred_region
      %43 = dma.done [#allocation6], 512
    $region17: #{tpu_custom_call.1} parent=1 // pred_fallthru
      _
    %p44 = scmp.eq.s32.totalorder 0, 0
    // Predicated region
    $region18: #{tpu_custom_call.1} parent=1 // pred_check
      %p45 = pneg %p44
    $region19: #{tpu_custom_call.1} parent=1 // pred_check_branch
      %47 = sbr.rel (%p45) target = $region21
    $region20: #{tpu_custom_call.1} parent=1 // pred_region
      %v48 = vld [vmem:[#allocation2] sm:$0xff]
      %v49 = vld [vmem:[#allocation5] sm:$0xff]
      %v50 = vmul.f32 %v48, %v49
      %v51 = vadd.f32 %v50, 0.0
      %v52 = vadd.f32 %v48, %v49
      %v53 = vadd.f32 %v52, 0.0
      %s54 = scalar_lea.vmem [#allocation2], 8
      %v55 = vld [vmem:[%s54] sm:$0xff]
      %s56 = scalar_lea.vmem [#allocation5], 8
      %v57 = vld [vmem:[%s56] sm:$0xff]
      %v58 = vmul.f32 %v55, %v57
      %v59 = vadd.f32 %v51, %v58
      %v60 = vadd.f32 %v55, %v57
      %v61 = vadd.f32 %v53, %v60
      %62 = vst [vmem:[#allocation7] sm:$0xff] %v59
      %63 = vst [vmem:[#allocation7 + $0x8] sm:$0xff] %v61
    $region21: #{tpu_custom_call.1} parent=1 // pred_fallthru
      _
    %p64 = scmp.ne.s32.totalorder 0, 0
    // Predicated region
    $region22: #{tpu_custom_call.1} parent=1 // pred_check
      %p65 = pneg %p64
    $region23: #{tpu_custom_call.1} parent=1 // pred_check_branch
      %67 = sbr.rel (%p65) target = $region25
    $region24: #{tpu_custom_call.1} parent=1 // pred_region
      %v68 = vld [vmem:[#allocation2] sm:$0xff]
      %v69 = vld [vmem:[#allocation5] sm:$0xff]
      %v70 = vmul.f32 %v68, %v69
      %v71 = vadd.f32 %v70, 0.0
      %v72 = vadd.f32 %v68, %v69
      %v73 = vadd.f32 %v72, 0.0
      %s74 = scalar_lea.vmem [#allocation2], 8
      %v75 = vld [vmem:[%s74] sm:$0xff]
      %s76 = scalar_lea.vmem [#allocation5], 8
      %v77 = vld [vmem:[%s76] sm:$0xff]
      %v78 = vmul.f32 %v75, %v77
      %v79 = vadd.f32 %v71, %v78
      %v80 = vadd.f32 %v75, %v77
      %v81 = vadd.f32 %v73, %v80
      %s82 = scalar_lea.vmem [#allocation2], 16
      %v83 = vld [vmem:[%s82] sm:$0xff]
      %s84 = scalar_lea.vmem [#allocation5], 16
      %v85 = vld [vmem:[%s84] sm:$0xff]
      %v86 = vmul.f32 %v83, %v85
      %v87 = vadd.f32 %v79, %v86
      %v88 = vadd.f32 %v83, %v85
      %v89 = vadd.f32 %v81, %v88
      %s90 = scalar_lea.vmem [#allocation2], 24
      %v91 = vld [vmem:[%s90] sm:$0xff]
      %s92 = scalar_lea.vmem [#allocation5], 24
      %v93 = vld [vmem:[%s92] sm:$0xff]
      %v94 = vmul.f32 %v91, %v93
      %v95 = vadd.f32 %v87, %v94
      %v96 = vadd.f32 %v91, %v93
      %v97 = vadd.f32 %v89, %v96
      %98 = vst [vmem:[#allocation7] sm:$0xff] %v95
      %99 = vst [vmem:[#allocation7 + $0x8] sm:$0xff] %v97
    $region25: #{tpu_custom_call.1} parent=1 // pred_fallthru
      _
    // Predicated region
    $region26: #{tpu_custom_call.1} parent=1 // pred_check
      _
    $region27: #{tpu_custom_call.1} parent=1 // pred_check_branch
      %101 = sbr.rel (0) target = $region29
    $region28: #{tpu_custom_call.1} parent=1 // pred_region
      %103 = vsyncadd [#allocation4], 0
      %s104 = sshll.u32 [#allocation7], 4
      %s105 = int_to_ptr.vmem [resolvable:$true] %s104
      %s106 = sshll.u32 %s2, 4
      %s107 = int_to_ptr.hbm [resolvable:$true] %s106
      %112 = dma.vmem_to_hbm [thread:$0]  %s105, 256, %s107, [#allocation4], 128, 128, 8
    $region29: #{tpu_custom_call.1} parent=1 // pred_fallthru
      _
    // Predicated region
    $region30: #{tpu_custom_call.1} parent=1 // pred_check
      _
    $region31: #{tpu_custom_call.1} parent=1 // pred_check_branch
      %114 = sbr.rel (0) target = $region33
    $region32: #{tpu_custom_call.1} parent=1 // pred_region
      %116 = dma.done [#allocation4], 256
    $region33: #{tpu_custom_call.1} parent=1 // pred_fallthru
      _
    %117 = vsyncpa [#allocation3], 1
    %118 = vsyncpa [#allocation6], 1
    %119 = vsyncpa [#allocation4], 1

</llo_original>
